<compile_context>
chip_gen: v7x
topology: tpu7x:2x2x1
jax: 0.10.0
libtpu: 0.0.40
codegen_flags: <defaults>
</compile_context>

<pallas_src>
import functools

import jax
import jax.numpy as jnp
from jax.experimental import pallas as pl
from jax.experimental.pallas import tpu as pltpu


def _round_up(x, m):
    return (x + m - 1) // m * m


def _pick_batch_tile(n, cap):
    # Largest ladder tile that divides n and respects the cap; the batch tile is
    # the sublane dim of the OUTPUT block, so it must be a multiple of 8 or the
    # full batch.  Falls back to the full batch (exempt from the /8 rule).
    for t in (256, 128, 64, 32, 16, 8):
        if t <= cap and n % t == 0:
            return t
    return n


def classifier_head_kernel(x_ref, w_ref, b_ref, o_ref, acc_ref, *,
                           inv_hw, hw, hw_tile, need_mask):
    # x_ref:   (n_tile, C, hw_tile)  native dtype (HW on the lane axis)
    # w_ref:   (C, Kp)               native dtype
    # b_ref:   (1, Kp)
    # o_ref:   (n_tile, Kp)
    # acc_ref: (n_tile, C) f32 scratch, persists across the HW reduction axis.
    j = pl.program_id(1)

    @pl.when(j == 0)
    def _init():
        acc_ref[...] = jnp.zeros_like(acc_ref)

    x = x_ref[...]
    if need_mask:
        # Ragged spatial tail: lanes past HW hold undefined data from the
        # partial edge block; zero them before the reduce (VPU work, hides
        # under DMA on this HBM-bound kernel).
        lane = jax.lax.broadcasted_iota(jnp.int32, x.shape, x.ndim - 1)
        x = jnp.where(j * hw_tile + lane < hw, x, jnp.zeros((), x.dtype))

    # Partial spatial sum over the lane (HW) axis, accumulated in f32 without
    # materializing an upcast copy of the whole tile.
    acc_ref[...] += jnp.sum(x, axis=-1, dtype=jnp.float32)

    @pl.when(j == pl.num_programs(1) - 1)
    def _finalize():
        pooled = acc_ref[...] * inv_hw          # true 1/(H*W)
        # Dropout(p=0.0) is the identity.
        # TODO(synk): if drop_rate > 0 in training mode, add pltpu.prng_* masking.
        logits = jnp.dot(pooled.astype(w_ref.dtype), w_ref[...],
                         preferred_element_type=jnp.float32)
        logits = logits + b_ref[...].astype(jnp.float32)
        o_ref[...] = logits.astype(o_ref.dtype)


def prepare_classifier_head_params(weight, bias):
    """One-time prep, hoisted out of the per-call path:
    torch.nn.Linear weight (K, C) -> (C, k_padded) with K padded to a
    lane-dense multiple of 128; bias -> (1, k_padded)."""
    K, _ = weight.shape
    k_padded = _round_up(K, 128)
    w_ck = weight.T
    b = bias
    if k_padded != K:
        w_ck = jnp.pad(w_ck, ((0, 0), (0, k_padded - K)))
        b = jnp.pad(bias, (0, k_padded - K))
    return w_ck, b.reshape(1, k_padded), K


def classifier_head(x_nchw, w_ck, b_row, num_classes, *,
                    x_block_budget_bytes=8 * 1024 * 1024,
                    vmem_limit_bytes=48 * 1024 * 1024):
    """x_nchw: (N, C, H, W); w_ck: (C, k_padded); b_row: (1, k_padded)."""
    N, C, H, W = x_nchw.shape
    HW = H * W
    Cw, k_padded = w_ck.shape
    assert Cw == C, "weight in_features must match channel count"

    x_itemsize = jnp.dtype(x_nchw.dtype).itemsize
    w_itemsize = jnp.dtype(w_ck.dtype).itemsize
    b_itemsize = jnp.dtype(b_row.dtype).itemsize

    # ---- VMEM accounting ----------------------------------------------------
    # Weight/bias blocks are constant across the grid but still counted as
    # double-buffered; keep headroom for compiler-internal scratch.
    fixed_bytes = 2 * C * k_padded * w_itemsize + 2 * k_padded * b_itemsize
    headroom = 4 * 1024 * 1024
    vmem_target = vmem_limit_bytes - headroom

    hw_floor = HW if HW <= 128 else 128
    # Per-x-block budget: requested size, but never more than half of what is
    # left after the fixed consumers (two x buffers must fit), and never below
    # the minimum legal block.
    x_budget = max(C * hw_floor * x_itemsize,
                   min(x_block_budget_bytes, (vmem_target - fixed_bytes) // 2))

    # ---- joint n_tile / hw_tile selection ------------------------------------
    n_cap = max(1, x_budget // max(1, C * hw_floor * x_itemsize))
    if N >= 16:
        n_cap = min(n_cap, N // 2)   # >= 2 parallel steps -> both v7x TCs busy
    n_tile = _pick_batch_tile(N, min(n_cap, 256))

    def _hw_tile_for(nt):
        hw_budget = max(1, x_budget // max(1, nt * C * x_itemsize))
        if HW <= 128 or HW <= hw_budget:
            return HW                              # full dim: no pad, no mask
        return max(128, min(hw_budget, HW) // 128 * 128)

    hw_tile = _hw_tile_for(n_tile)

    def _total_vmem(nt, hwt):
        x_blk = nt * C * hwt * x_itemsize
        out_blk = nt * k_padded * x_itemsize
        acc = nt * C * 4
        return 2 * x_blk + 2 * out_blk + acc + fixed_bytes

    # Verify the full budget; shrink the lane tile first, then the batch tile.
    for _ in range(32):
        if _total_vmem(n_tile, hw_tile) <= vmem_target:
            break
        if HW > 128 and hw_tile > 128:
            if hw_tile == HW:
                hw_tile = max(128, (HW // 2) // 128 * 128)
            else:
                hw_tile = max(128, (hw_tile // 2) // 128 * 128)
        else:
            smaller = [t for t in (128, 64, 32, 16, 8) if t < n_tile and N % t == 0]
            if not smaller:
                break
            n_tile = smaller[0]

    hw_steps = pl.cdiv(HW, hw_tile)
    need_mask = (HW % hw_tile) != 0

    # ---- layout glue (free reshape, no transpose, no pad) --------------------
    x = x_nchw.reshape(N, C, HW)

    grid = (N // n_tile, hw_steps)
    kernel = functools.partial(classifier_head_kernel,
                               inv_hw=1.0 / float(HW), hw=HW,
                               hw_tile=hw_tile, need_mask=need_mask)

    cost = pl.CostEstimate(
        flops=int(N * C * HW + 2 * N * C * k_padded),
        transcendentals=0,
        bytes_accessed=int(N * C * HW * x_itemsize
                           + C * k_padded * w_itemsize
                           + k_padded * b_itemsize
                           + N * k_padded * x_itemsize),
    )

    out_padded = pl.pallas_call(
        kernel,
        out_shape=jax.ShapeDtypeStruct((N, k_padded), x_nchw.dtype),
        grid=grid,
        in_specs=[
            pl.BlockSpec((n_tile, C, hw_tile), lambda i, j: (i, 0, j)),
            pl.BlockSpec((C, k_padded), lambda i, j: (0, 0)),
            pl.BlockSpec((1, k_padded), lambda i, j: (0, 0)),
        ],
        out_specs=pl.BlockSpec((n_tile, k_padded), lambda i, j: (i, 0)),
        scratch_shapes=[pltpu.VMEM((n_tile, C), jnp.float32)],
        compiler_params=pltpu.CompilerParams(
            dimension_semantics=("parallel", "arbitrary"),
            vmem_limit_bytes=vmem_limit_bytes,
        ),
        cost_estimate=cost,
    )(x, w_ck, b_row)

    return out_padded[:, :num_classes]


if __name__ == "__main__":
    # Small shapes consistent with the module: in_features = C = 4, num_classes = 10
    N, C, H, W = 2, 4, 16, 16
    num_classes = 10

    key = jax.random.PRNGKey(0)
    kx, kw, kb = jax.random.split(key, 3)

    x = jax.random.normal(kx, (N, C, H, W), dtype=jnp.float32)

    # Deterministic Linear init (PyTorch-style uniform bound 1/sqrt(in_features))
    bound = 1.0 / jnp.sqrt(jnp.float32(C))
    weight = jax.random.uniform(kw, (num_classes, C), minval=-bound, maxval=bound,
                                dtype=jnp.float32)
    bias = jax.random.uniform(kb, (num_classes,), minval=-bound, maxval=bound,
                              dtype=jnp.float32)

    # One-time parameter prep, hoisted out of the per-call path.
    w_ck, b_row, K = prepare_classifier_head_params(weight, bias)

    head = jax.jit(functools.partial(classifier_head, num_classes=K))
    out = head(x, w_ck, b_row)
    out = jax.block_until_ready(out)

    # Pure-JAX reference for a sanity check
    ref = jnp.mean(x, axis=(2, 3)) @ weight.T + bias
    assert out.shape == (N, num_classes)
    assert jnp.allclose(out, ref, atol=1e-5, rtol=1e-5)

    print("KERNEL_OK")
</pallas_src>

<mosaic_0001>
module attributes {stable_mosaic.version = 11 : i64} {
  func.func @classifier_head_kernel(%arg0: i32, %arg1: i32, %arg2: memref<2x4x256xf32, #tpu.memory_space<vmem>>, %arg3: memref<4x128xf32, #tpu.memory_space<vmem>>, %arg4: memref<1x128xf32, #tpu.memory_space<vmem>>, %arg5: memref<2x128xf32, #tpu.memory_space<vmem>>, %arg6: memref<2x4xf32, #tpu.memory_space<vmem>>) attributes {dimension_semantics = [#tpu.dimension_semantics<parallel>, #tpu.dimension_semantics<arbitrary>], iteration_bounds = array<i64: 1, 1>, scalar_prefetch = 0 : i64, scratch_operands = 1 : i64, tpu.core_type = #tpu.core_type<tc>, window_params = [{transform_indices = @transform_0, window_bounds = array<i64: 2, 4, 256>}, {pipeline_mode = #tpu.pipeline_mode<synchronous>, transform_indices = @transform_1, window_bounds = array<i64: 4, 128>}, {pipeline_mode = #tpu.pipeline_mode<synchronous>, transform_indices = @transform_2, window_bounds = array<i64: 1, 128>}, {transform_indices = @transform_3, window_bounds = array<i64: 2, 128>}]} {
    %c0_i32 = arith.constant 0 : i32
    %0 = arith.cmpi eq, %arg1, %c0_i32 : i32
    %1 = arith.extui %0 : i1 to i32
    %c0_i32_0 = arith.constant 0 : i32
    %2 = arith.cmpi ne, %1, %c0_i32_0 : i32
    scf.if %2 {
      %cst_9 = arith.constant 0.000000e+00 : f32
      %11 = vector.broadcast %cst_9 : f32 to vector<2x4xf32>
      %c0_10 = arith.constant 0 : index
      %c0_11 = arith.constant 0 : index
      %12 = vector.load %arg6[%c0_10, %c0_11] : memref<2x4xf32, #tpu.memory_space<vmem>>, vector<2x4xf32>
      tpu.vector_store %arg6[%c0_10, %c0_11], %11 {strides = array<i32>} : memref<2x4xf32, #tpu.memory_space<vmem>>, vector<2x4xf32>,
    } else {
    }
    %c0 = arith.constant 0 : index
    %c0_1 = arith.constant 0 : index
    %c0_2 = arith.constant 0 : index
    %3 = vector.load %arg2[%c0, %c0_1, %c0_2] : memref<2x4x256xf32, #tpu.memory_space<vmem>>, vector<2x4x256xf32>
    %c0_3 = arith.constant 0 : index
    %c0_4 = arith.constant 0 : index
    %4 = vector.load %arg6[%c0_3, %c0_4] : memref<2x4xf32, #tpu.memory_space<vmem>>, vector<2x4xf32>
    %cst = arith.constant dense<0.000000e+00> : vector<2x4xf32>
    %5 = vector.multi_reduction <add>, %3, %cst [2] : vector<2x4x256xf32> to vector<2x4xf32>
    %6 = arith.addf %4, %5 : vector<2x4xf32>
    %c0_5 = arith.constant 0 : index
    %c0_6 = arith.constant 0 : index
    %7 = vector.load %arg6[%c0_5, %c0_6] : memref<2x4xf32, #tpu.memory_space<vmem>>, vector<2x4xf32>
    tpu.vector_store %arg6[%c0_5, %c0_6], %6 {strides = array<i32>} : memref<2x4xf32, #tpu.memory_space<vmem>>, vector<2x4xf32>,
    %c0_i32_7 = arith.constant 0 : i32
    %8 = arith.cmpi eq, %arg1, %c0_i32_7 : i32
    %9 = arith.extui %8 : i1 to i32
    %c0_i32_8 = arith.constant 0 : i32
    %10 = arith.cmpi ne, %9, %c0_i32_8 : i32
    scf.if %10 {
      %c0_9 = arith.constant 0 : index
      %c0_10 = arith.constant 0 : index
      %11 = vector.load %arg6[%c0_9, %c0_10] : memref<2x4xf32, #tpu.memory_space<vmem>>, vector<2x4xf32>
      %cst_11 = arith.constant 3.906250e-03 : f32
      %12 = vector.broadcast %cst_11 : f32 to vector<2x4xf32>
      %13 = arith.mulf %11, %12 : vector<2x4xf32>
      %c0_12 = arith.constant 0 : index
      %c0_13 = arith.constant 0 : index
      %14 = vector.load %arg3[%c0_12, %c0_13] : memref<4x128xf32, #tpu.memory_space<vmem>>, vector<4x128xf32>
      %cst_14 = arith.constant dense<0.000000e+00> : vector<2x128xf32>
      %15 = tpu.matmul %13, %14, %cst_14 {dimension_numbers = #tpu.dot_dimension_numbers<[1], [0], [0], [1], [0, 0, 1, 1], [], []>} : vector<2x4xf32>, vector<4x128xf32>, vector<2x128xf32> -> vector<2x128xf32>
      %c0_15 = arith.constant 0 : index
      %c0_16 = arith.constant 0 : index
      %16 = vector.load %arg4[%c0_15, %c0_16] : memref<1x128xf32, #tpu.memory_space<vmem>>, vector<1x128xf32>
      %17 = vector.broadcast %16 : vector<1x128xf32> to vector<2x128xf32>
      %18 = arith.addf %15, %17 : vector<2x128xf32>
      %c0_17 = arith.constant 0 : index
      %c0_18 = arith.constant 0 : index
      %19 = vector.load %arg5[%c0_17, %c0_18] : memref<2x128xf32, #tpu.memory_space<vmem>>, vector<2x128xf32>
      tpu.vector_store %arg5[%c0_17, %c0_18], %18 {strides = array<i32>} : memref<2x128xf32, #tpu.memory_space<vmem>>, vector<2x128xf32>,
    } else {
    }
    return
  }
  func.func @transform_0(%arg0: i32, %arg1: i32) -> (i32, i32, i32) {
    %c0_i32 = arith.constant 0 : i32
    %c0_i32_0 = arith.constant 0 : i32
    return %arg0, %c0_i32, %arg1 : i32, i32, i32
  }
  func.func @transform_1(%arg0: i32, %arg1: i32) -> (i32, i32) {
    %c0_i32 = arith.constant 0 : i32
    %c0_i32_0 = arith.constant 0 : i32
    %c0_i32_1 = arith.constant 0 : i32
    return %c0_i32, %c0_i32_0 : i32, i32
  }
  func.func @transform_2(%arg0: i32, %arg1: i32) -> (i32, i32) {
    %c0_i32 = arith.constant 0 : i32
    %c0_i32_0 = arith.constant 0 : i32
    %c0_i32_1 = arith.constant 0 : i32
    return %c0_i32, %c0_i32_0 : i32, i32
  }
  func.func @transform_3(%arg0: i32, %arg1: i32) -> (i32, i32) {
    %c0_i32 = arith.constant 0 : i32
    %c0_i32_0 = arith.constant 0 : i32
    return %arg0, %c0_i32 : i32, i32
  }
}

</mosaic_0001>

<llo_original>
// kernel: classifier_head.1
$region0: #{classifier_head.1}
  #allocation0 [shape = 'u32[]', space=smem, size = 0x4, offset = 0x4, fixed_abs, tag = 'smem constant byte address 0x4 - core index']
  #allocation1 [shape = 'u32[144,128]{1,0:T(1,128)}', space=vmem, size = 0x12000, scoped, tag = 'internal scratch']
  #allocation2 [shape = 'f32[2,4]{1,0:T(2,128)}', space=vmem, size = 0x400, scoped, tag = 'scratch operand']
  %s0 = inlined_call_operand.vmem [shape: f32[2,4,256], index: 0, kind: input, shape index: {}]
  %s1 = inlined_call_operand.vmem [shape: f32[4,128], index: 1, kind: input, shape index: {}]
  %s2 = inlined_call_operand.vmem [shape: f32[1,128], index: 2, kind: input, shape index: {}]
  %s3 = inlined_call_operand.hbm [shape: f32[2,128], index: 3, kind: output, shape index: {}]
  %s4 = sld [smem:[#allocation0]]
  $region30: #{classifier_head.1} parent=0
    _
  %s6 = ssub.s32 1, %s4
  %s7 = scalar_select 0, %s6, %s4
  $region1: #{classifier_head.1} parent=0
    #allocation3 [shape = 'u8[1024]{0}', space=vmem, size = 0x400, scoped, tag = 'output window, operand 0, single buffered']
    #allocation4 [shape = 's32[1]{0}', space=sflag, size = 0x4, scoped, tag = 'scoped memory for classifier_head.1']
    %8 = vsyncpa [#allocation4], 0
    // Predicated region
    $region2: #{classifier_head.1} parent=1 // pred_check
      _
    $region3: #{classifier_head.1} parent=1 // pred_check_branch
      %10 = sbr.rel (0) target = $region5
    $region4: #{classifier_head.1} parent=1 // pred_region
      _
    $region5: #{classifier_head.1} parent=1 // pred_fallthru
      _
    // Predicated region
    $region6: #{classifier_head.1} parent=1 // pred_check
      _
    $region7: #{classifier_head.1} parent=1 // pred_check_branch
      %12 = sbr.rel (0) target = $region9
    $region8: #{classifier_head.1} parent=1 // pred_region
      _
    $region9: #{classifier_head.1} parent=1 // pred_fallthru
      _
    // Predicated region
    $region10: #{classifier_head.1} parent=1 // pred_check
      _
    $region11: #{classifier_head.1} parent=1 // pred_check_branch
      %14 = sbr.rel (0) target = $region13
    $region12: #{classifier_head.1} parent=1 // pred_region
      _
    $region13: #{classifier_head.1} parent=1 // pred_fallthru
      _
    %p15 = scmp.eq.s32.totalorder 0, 0
    // Predicated region
    $region14: #{classifier_head.1} parent=1 // pred_check
      %p16 = pneg %p15
    $region15: #{classifier_head.1} parent=1 // pred_check_branch
      %18 = sbr.rel (%p16) target = $region17
    $region16: #{classifier_head.1} parent=1 // pred_region
      %vm19 = vcmask 25600
      %20 = vst.msk [vmem:[#allocation2] sm:$0x3] %vm19, 0.0
    $region17: #{classifier_head.1} parent=1 // pred_fallthru
      _
    %v21 = vld [vmem:[%s0] sm:$0xff]
    %v22 = vld [vmem:[%s0 + $0x8] sm:$0xff]
    %v23 = vld [vmem:[#allocation2] sm:$0x3]
    %v26 = vcombine.high %v21, %v21
    %v27 = vcombine.high %v22, %v22
    %vm30 = vcmask 1043456
    %v31 = vsel %vm30, %v21, 0.0
    %v32 = vsel %vm30, %v26, 0.0
    %v33 = vadd.f32 %v31, %v32
    %34 = vadd.xlane.f32.xlu0 %v33
    %v35 = vpop.xlane.xlu0 %34
    %v36 = vsel %vm30, %v22, 0.0
    %v37 = vsel %vm30, %v27, 0.0
    %v38 = vadd.f32 %v36, %v37
    %39 = vadd.xlane.f32.xlu0 %v38
    %v40 = vpop.xlane.xlu0 %39
    %v43 = vlaneseq
    %v44 = vand.u32 %v43, 127
    %v45 = vlaneseq
    %v46 = vshrl.u32 %v45, 7
    %v47 = vsub.s32 %v44, %v46
    %v48 = vrot.slane %v35, %v47
    %v49 = vlaneseq
    %v50 = vshrl.u32 %v49, 7
    %v51 = vsub.s32 %v44, %v50
    %v52 = vrot.slane %v40, %v51
    %vm53 = vcmask 1041409
    %v54 = vsel %vm53, %v52, %v48
    %v56 = vadd.f32 %v23, %v54
    %vm57 = vcmask 25600
    %58 = vst.msk [vmem:[#allocation2] sm:$0x3] %vm57, %v56
    // Predicated region
    $region18: #{classifier_head.1} parent=1 // pred_check
      %p59 = pneg %p15
    $region19: #{classifier_head.1} parent=1 // pred_check_branch
      %61 = sbr.rel (%p59) target = $region21
    $region20: #{classifier_head.1} parent=1 // pred_region
      %v62 = vld [vmem:[#allocation2] sm:$0x3]
      %v63 = vmul.f32 %v62, 0.00390625
      %v64 = vld [vmem:[%s1] sm:$0xf]
      %v65 = vld [vmem:[%s2] sm:$0x1]
      %v67 = vlaneseq
      %v68 = vshrl.u32 %v67, 7
      %v69 = vsub.s32 0, %v68
      %v70 = vrot.slane %v65, %v69
      %vm72 = vcmask 31744
      %v74 = vsel %vm72, %v63, 0
      %v77 = vsel %vm30, %v64, 0
      %79 = vmatprep.subr.mxu0 0.0
      %80 = vmatpush1.msra.mxu0 %v77
      %81 = vmatprep.subr.mxu0 0.0
      %82 = vmatpush1.msra.mxu0 0.0
      %83 = vmatprep.subr.mxu0 0.0
      %84 = vmatpush1.msra.mxu0 0.0
      %85 = vmatprep.subr.mxu0 0.0
      %86 = vmatpush1.msra.mxu0 0.0
      %87 = vmatprep.subr.mxu0 0.0
      %88 = vmatpush1.msra.mxu0 0.0
      %89 = vmatprep.subr.mxu0 0.0
      %90 = vmatpush1.msra.mxu0 0.0
      %91 = vmatprep.subr.mxu0 0.0
      %92 = vmatpush1.msra.mxu0 0.0
      %93 = vmatprep.subr.mxu0 0.0
      %94 = vmatpush1.msra.mxu0 0.0
      %95 = vmatprep.subr.mxu0 0.0
      %96 = vmatpush1.msra.mxu0 0.0
      %97 = vmatprep.subr.mxu0 0.0
      %98 = vmatpush1.msra.mxu0 0.0
      %99 = vmatprep.subr.mxu0 0.0
      %100 = vmatpush1.msra.mxu0 0.0
      %101 = vmatprep.subr.mxu0 0.0
      %102 = vmatpush1.msra.mxu0 0.0
      %103 = vmatprep.subr.mxu0 0.0
      %104 = vmatpush1.msra.mxu0 0.0
      %105 = vmatprep.subr.mxu0 0.0
      %106 = vmatpush1.msra.mxu0 0.0
      %107 = vmatprep.subr.mxu0 0.0
      %108 = vmatpush1.msra.mxu0 0.0
      %109 = vmatprep.subr.mxu0 0.0
      %110 = vmatpush1.msra.mxu0 0.0
      %111 = vmatprep.subr.mxu0 0.0
      %112 = vmatpush1.msra.mxu0 0.0
      %113 = vmatprep.subr.mxu0 0.0
      %114 = vmatpush1.msra.mxu0 0.0
      %115 = vmatprep.subr.mxu0 0.0
      %116 = vmatpush1.msra.mxu0 0.0
      %117 = vmatprep.subr.mxu0 0.0
      %118 = vmatpush1.msra.mxu0 0.0
      %119 = vmatprep.subr.mxu0 0.0
      %120 = vmatpush1.msra.mxu0 0.0
      %121 = vmatprep.subr.mxu0 0.0
      %122 = vmatpush1.msra.mxu0 0.0
      %123 = vmatprep.subr.mxu0 0.0
      %124 = vmatpush1.msra.mxu0 0.0
      %125 = vmatprep.subr.mxu0 0.0
      %126 = vmatpush1.msra.mxu0 0.0
      %127 = vmatprep.subr.mxu0 0.0
      %128 = vmatpush1.msra.mxu0 0.0
      %129 = vmatprep.subr.mxu0 0.0
      %130 = vmatpush1.msra.mxu0 0.0
      %131 = vmatprep.subr.mxu0 0.0
      %132 = vmatpush1.msra.mxu0 0.0
      %133 = vmatprep.subr.mxu0 0.0
      %134 = vmatpush1.msra.mxu0 0.0
      %135 = vmatprep.subr.mxu0 0.0
      %136 = vmatpush1.msra.mxu0 0.0
      %137 = vmatprep.subr.mxu0 0.0
      %138 = vmatpush1.msra.mxu0 0.0
      %139 = vmatprep.subr.mxu0 0.0
      %140 = vmatpush1.msra.mxu0 0.0
      %141 = vmatprep.subr.mxu0 0.0
      %142 = vmatpush1.msra.mxu0 0.0
      %143 = vmatprep.mubr.f32.mxu0 0.0
      %144 = vmatmul.mubr.f32.gmra.mrb[0].mxu0 %v74
      %v145 = vpop.f32.mrb[0].mxu0
      %v146 = vadd.f32 %v70, %v145
      %v147 = vpop.f32.mrb[0].mxu0
      %148 = vdwg.mxu0
      %149 = vst [vmem:[#allocation3] sm:$0x3] %v146
    $region21: #{classifier_head.1} parent=1 // pred_fallthru
      _
    // Predicated region
    $region22: #{classifier_head.1} parent=1 // pred_check
      _
    $region23: #{classifier_head.1} parent=1 // pred_check_branch
      %151 = sbr.rel (0) target = $region25
    $region24: #{classifier_head.1} parent=1 // pred_region
      %s153 = ssub.s32 32, 32
      %154 = vsyncadd [#allocation4], %s153
      %s156 = sshll.u32 [#allocation3], 4
      %s157 = int_to_ptr.vmem [resolvable:$true] %s156
      %159 = dma.vmem_to_hbm [thread:$0]  %s157, 32, %s3, [#allocation4]
    $region25: #{classifier_head.1} parent=1 // pred_fallthru
      _
    // Predicated region
    $region26: #{classifier_head.1} parent=1 // pred_check
      _
    $region27: #{classifier_head.1} parent=1 // pred_check_branch
      %161 = sbr.rel (0) target = $region29
    $region28: #{classifier_head.1} parent=1 // pred_region
      %162 = dma.done [#allocation4], 32
    $region29: #{classifier_head.1} parent=1 // pred_fallthru
      _
    %163 = vsyncpa [#allocation4], 1

</llo_original>
